<compile_context>
chip_gen: v6e
topology: v6e:2x2x1
jax: 0.10.0
libtpu: 0.0.40
codegen_flags: <defaults>
</compile_context>

<pallas_src>
import jax
import jax.numpy as jnp
from jax.experimental import pallas as pl
from jax.experimental.pallas import tpu as pltpu

_SUBLANE = 8


def _round_up(v, m):
    return ((v + m - 1) // m) * m


def _bpnet_kernel(x_ref, w1_ref, b1_ref, w2_ref, b2_ref, o_ref):
    # hidden = tanh(x @ W1 + b1).
    # The cast is a no-op on the default f32 path; on the bf16 opt-in path it
    # is an in-kernel downcast (free filler in this mem-bound kernel), so no
    # separate pre-cast HBM pass over x is ever materialized.
    x = x_ref[...].astype(w1_ref.dtype)
    h = jnp.tanh(
        jnp.dot(x, w1_ref[...], preferred_element_type=jnp.float32)
        + b1_ref[...]
    )
    # out = hidden @ W2 + b2 -> narrow (tile_b, n_output) store.  The partial
    # lane store is cheap here and saves ~32x of output HBM bytes vs a
    # 128-lane-padded f32 store.
    o_ref[...] = (
        jnp.dot(h.astype(w2_ref.dtype), w2_ref[...],
                preferred_element_type=jnp.float32)
        + b2_ref[...]
    ).astype(o_ref.dtype)


def bpnet_forward(x, w1, b1, w2, b2, *, tile_b=4096, matmul_dtype=None):
    """Fused BPNet forward.

    x : (B, S, F) float, flattened to (B, S*F) like the PyTorch reshape.
    w1: (n_feature, n_hidden)  == PyTorch hiddden.weight.T
    b1: (n_hidden,) or (1, n_hidden)
    w2: (n_hidden, n_output)   == PyTorch out.weight.T
    b2: (n_output,) or (1, n_output)
    matmul_dtype: None -> use x's dtype (strict f32 parity);
                  jnp.bfloat16 -> opt-in reduced-precision MXU path.
    Returns (B, n_output) float32.
    """
    batch = x.shape[0]
    x_flat = x.reshape(batch, -1)            # contiguous reshape: no extra HBM pass
    n_feature = x_flat.shape[1]
    n_hidden = w1.shape[1]
    n_output = w2.shape[1]

    if matmul_dtype is None:
        matmul_dtype = x_flat.dtype          # strict-parity default (f32 in, f32 MXU)

    # Weights / biases are tiny (< ~2.5 KiB): cast once at the wrapper, then
    # stay VMEM-resident across every batch tile via constant index maps.
    # Bias adds, accumulation and tanh stay in f32 on all generations.
    w1 = jnp.asarray(w1, matmul_dtype)
    w2 = jnp.asarray(w2, matmul_dtype)
    b1 = jnp.asarray(b1, jnp.float32).reshape(1, n_hidden)
    b2 = jnp.asarray(b2, jnp.float32).reshape(1, n_output)

    # Batch tile selection:
    #   - tiny batch: one full-array block (block dims equal full dims).
    #   - otherwise: sublane-aligned, no bigger than the rounded-up batch, and
    #     capped so the grid has >= 2 steps when possible (v7x megacore).
    if batch <= _SUBLANE:
        tile_b = batch
    else:
        tile_b = max(_SUBLANE, min(tile_b, _round_up(batch, _SUBLANE)))
        if batch >= 2 * _SUBLANE:
            tile_b = min(tile_b, _round_up(pl.cdiv(batch, 2), _SUBLANE))

    # Ragged final tile is handled by Pallas edge-block masking (no batch pad).
    grid = (pl.cdiv(batch, tile_b),)

    def const_spec(shape):
        # Full-array, VMEM-resident operand (weights / biases): constant index
        # map, so no re-streaming across batch tiles.
        return pl.BlockSpec(shape, lambda i: (0, 0))

    out = pl.pallas_call(
        _bpnet_kernel,
        out_shape=jax.ShapeDtypeStruct((batch, n_output), jnp.float32),
        grid=grid,
        in_specs=[
            pl.BlockSpec((tile_b, n_feature), lambda i: (i, 0)),   # streamed x
            const_spec(w1.shape),
            const_spec(b1.shape),
            const_spec(w2.shape),
            const_spec(b2.shape),
        ],
        out_specs=pl.BlockSpec((tile_b, n_output), lambda i: (i, 0)),
        compiler_params=pltpu.CompilerParams(
            dimension_semantics=("parallel",),
        ),
    )(x_flat, w1, b1, w2, b2)

    return out


if __name__ == "__main__":
    # Shapes implied by the module: seq_len * feature_len == n_feature == 16.
    batch, seq_len, feature_len = 2, 4, 4
    n_feature, n_hidden, n_output = 16, 30, 4

    key = jax.random.PRNGKey(0)
    kx, k1, kb1, k2, kb2 = jax.random.split(key, 5)

    x = jax.random.normal(kx, (batch, seq_len, feature_len), dtype=jnp.float32)

    # Deterministic parameters (PyTorch Linear stores (out, in); we keep (in, out)).
    w1 = jax.random.normal(k1, (n_feature, n_hidden), dtype=jnp.float32) * 0.1
    b1 = jax.random.normal(kb1, (n_hidden,), dtype=jnp.float32) * 0.1
    w2 = jax.random.normal(k2, (n_hidden, n_output), dtype=jnp.float32) * 0.1
    b2 = jax.random.normal(kb2, (n_output,), dtype=jnp.float32) * 0.1

    out = bpnet_forward(x, w1, b1, w2, b2)          # default strict-f32 path
    out = jax.block_until_ready(out)

    # Pure-JAX f32 reference of the module's forward pass.
    ref = jnp.tanh(x.reshape(batch, -1) @ w1 + b1[None, :]) @ w2 + b2[None, :]
    assert out.shape == (batch, n_output)
    # Tolerance covers MXU default-precision rounding of f32 matmuls in either path.
    assert jnp.allclose(out, ref, atol=1e-2, rtol=1e-2), float(jnp.max(jnp.abs(out - ref)))

    print("KERNEL_OK")
</pallas_src>

<mosaic_0001>
module attributes {stable_mosaic.version = 11 : i64} {
  func.func @_bpnet_kernel(%arg0: i32, %arg1: memref<2x16xf32, #tpu.memory_space<vmem>>, %arg2: memref<16x30xf32, #tpu.memory_space<vmem>>, %arg3: memref<1x30xf32, #tpu.memory_space<vmem>>, %arg4: memref<30x4xf32, #tpu.memory_space<vmem>>, %arg5: memref<1x4xf32, #tpu.memory_space<vmem>>, %arg6: memref<2x4xf32, #tpu.memory_space<vmem>>) attributes {dimension_semantics = [#tpu.dimension_semantics<parallel>], iteration_bounds = array<i64: 1>, scalar_prefetch = 0 : i64, scratch_operands = 0 : i64, tpu.core_type = #tpu.core_type<tc>, window_params = [{transform_indices = @transform_0, window_bounds = array<i64: 2, 16>}, {pipeline_mode = #tpu.pipeline_mode<synchronous>, transform_indices = @transform_1, window_bounds = array<i64: 16, 30>}, {pipeline_mode = #tpu.pipeline_mode<synchronous>, transform_indices = @transform_2, window_bounds = array<i64: 1, 30>}, {pipeline_mode = #tpu.pipeline_mode<synchronous>, transform_indices = @transform_3, window_bounds = array<i64: 30, 4>}, {pipeline_mode = #tpu.pipeline_mode<synchronous>, transform_indices = @transform_4, window_bounds = array<i64: 1, 4>}, {transform_indices = @transform_5, window_bounds = array<i64: 2, 4>}]} {
    %c0 = arith.constant 0 : index
    %c0_0 = arith.constant 0 : index
    %0 = vector.load %arg1[%c0, %c0_0] : memref<2x16xf32, #tpu.memory_space<vmem>>, vector<2x16xf32>
    %c0_1 = arith.constant 0 : index
    %c0_2 = arith.constant 0 : index
    %1 = vector.load %arg2[%c0_1, %c0_2] : memref<16x30xf32, #tpu.memory_space<vmem>>, vector<16x30xf32>
    %cst = arith.constant dense<0.000000e+00> : vector<2x30xf32>
    %2 = tpu.matmul %0, %1, %cst {dimension_numbers = #tpu.dot_dimension_numbers<[1], [0], [0], [1], [0, 0, 1, 1], [], []>} : vector<2x16xf32>, vector<16x30xf32>, vector<2x30xf32> -> vector<2x30xf32>
    %c0_3 = arith.constant 0 : index
    %c0_4 = arith.constant 0 : index
    %3 = vector.load %arg3[%c0_3, %c0_4] : memref<1x30xf32, #tpu.memory_space<vmem>>, vector<1x30xf32>
    %4 = vector.broadcast %3 : vector<1x30xf32> to vector<2x30xf32>
    %5 = arith.addf %2, %4 : vector<2x30xf32>
    %6 = math.tanh %5 : vector<2x30xf32>
    %c0_5 = arith.constant 0 : index
    %c0_6 = arith.constant 0 : index
    %7 = vector.load %arg4[%c0_5, %c0_6] : memref<30x4xf32, #tpu.memory_space<vmem>>, vector<30x4xf32>
    %cst_7 = arith.constant dense<0.000000e+00> : vector<2x4xf32>
    %8 = tpu.matmul %6, %7, %cst_7 {dimension_numbers = #tpu.dot_dimension_numbers<[1], [0], [0], [1], [0, 0, 1, 1], [], []>} : vector<2x30xf32>, vector<30x4xf32>, vector<2x4xf32> -> vector<2x4xf32>
    %c0_8 = arith.constant 0 : index
    %c0_9 = arith.constant 0 : index
    %9 = vector.load %arg5[%c0_8, %c0_9] : memref<1x4xf32, #tpu.memory_space<vmem>>, vector<1x4xf32>
    %10 = vector.broadcast %9 : vector<1x4xf32> to vector<2x4xf32>
    %11 = arith.addf %8, %10 : vector<2x4xf32>
    %c0_10 = arith.constant 0 : index
    %c0_11 = arith.constant 0 : index
    %12 = vector.load %arg6[%c0_10, %c0_11] : memref<2x4xf32, #tpu.memory_space<vmem>>, vector<2x4xf32>
    tpu.vector_store %arg6[%c0_10, %c0_11], %11 {strides = array<i32>} : memref<2x4xf32, #tpu.memory_space<vmem>>, vector<2x4xf32>,
    return
  }
  func.func @transform_0(%arg0: i32) -> (i32, i32) {
    %c0_i32 = arith.constant 0 : i32
    %c0_i32_0 = arith.constant 0 : i32
    return %arg0, %c0_i32 : i32, i32
  }
  func.func @transform_1(%arg0: i32) -> (i32, i32) {
    %c0_i32 = arith.constant 0 : i32
    %c0_i32_0 = arith.constant 0 : i32
    %c0_i32_1 = arith.constant 0 : i32
    return %c0_i32, %c0_i32_0 : i32, i32
  }
  func.func @transform_2(%arg0: i32) -> (i32, i32) {
    %c0_i32 = arith.constant 0 : i32
    %c0_i32_0 = arith.constant 0 : i32
    %c0_i32_1 = arith.constant 0 : i32
    return %c0_i32, %c0_i32_0 : i32, i32
  }
  func.func @transform_3(%arg0: i32) -> (i32, i32) {
    %c0_i32 = arith.constant 0 : i32
    %c0_i32_0 = arith.constant 0 : i32
    %c0_i32_1 = arith.constant 0 : i32
    return %c0_i32, %c0_i32_0 : i32, i32
  }
  func.func @transform_4(%arg0: i32) -> (i32, i32) {
    %c0_i32 = arith.constant 0 : i32
    %c0_i32_0 = arith.constant 0 : i32
    %c0_i32_1 = arith.constant 0 : i32
    return %c0_i32, %c0_i32_0 : i32, i32
  }
  func.func @transform_5(%arg0: i32) -> (i32, i32) {
    %c0_i32 = arith.constant 0 : i32
    %c0_i32_0 = arith.constant 0 : i32
    return %arg0, %c0_i32 : i32, i32
  }
}

</mosaic_0001>

<llo_original>
// kernel: tpu_custom_call.1
$region0: #{tpu_custom_call.1}
  #allocation0 [shape = 'u32[]', space=smem, size = 0x4, offset = 0x4, fixed_abs, tag = 'smem constant byte address 0x4 - core index']
  #allocation1 [shape = 'u32[144,128]{1,0:T(1,128)}', space=vmem, size = 0x12000, scoped, tag = 'internal scratch']
  %s0 = inlined_call_operand.vmem [shape: f32[2,16], index: 0, kind: input, shape index: {}]
  %s1 = inlined_call_operand.vmem [shape: f32[16,30], index: 1, kind: input, shape index: {}]
  %s2 = inlined_call_operand.vmem [shape: f32[1,30], index: 2, kind: input, shape index: {}]
  %s3 = inlined_call_operand.vmem [shape: f32[30,4], index: 3, kind: input, shape index: {}]
  %s4 = inlined_call_operand.vmem [shape: f32[1,4], index: 4, kind: input, shape index: {}]
  %s5 = inlined_call_operand.hbm [shape: f32[2,4], index: 5, kind: output, shape index: {}]
  %s6 = sld [smem:[#allocation0]]
  $region30: #{tpu_custom_call.1} parent=0
    _
  %s8 = ssub.s32 1, %s6
  %s9 = scalar_select 0, %s8, %s6
  $region1: #{tpu_custom_call.1} parent=0
    #allocation2 [shape = 'u8[1024]{0}', space=vmem, size = 0x400, scoped, tag = 'output window, operand 0, single buffered']
    #allocation3 [shape = 's32[1]{0}', space=sflag, size = 0x4, scoped, tag = 'scoped memory for tpu_custom_call.1']
    %10 = vsyncpa [#allocation3], 0
    // Predicated region
    $region2: #{tpu_custom_call.1} parent=1 // pred_check
      _
    $region3: #{tpu_custom_call.1} parent=1 // pred_check_branch
      %12 = sbr.rel (0) target = $region5
    $region4: #{tpu_custom_call.1} parent=1 // pred_region
      _
    $region5: #{tpu_custom_call.1} parent=1 // pred_fallthru
      _
    // Predicated region
    $region6: #{tpu_custom_call.1} parent=1 // pred_check
      _
    $region7: #{tpu_custom_call.1} parent=1 // pred_check_branch
      %14 = sbr.rel (0) target = $region9
    $region8: #{tpu_custom_call.1} parent=1 // pred_region
      _
    $region9: #{tpu_custom_call.1} parent=1 // pred_fallthru
      _
    // Predicated region
    $region10: #{tpu_custom_call.1} parent=1 // pred_check
      _
    $region11: #{tpu_custom_call.1} parent=1 // pred_check_branch
      %16 = sbr.rel (0) target = $region13
    $region12: #{tpu_custom_call.1} parent=1 // pred_region
      _
    $region13: #{tpu_custom_call.1} parent=1 // pred_fallthru
      _
    // Predicated region
    $region14: #{tpu_custom_call.1} parent=1 // pred_check
      _
    $region15: #{tpu_custom_call.1} parent=1 // pred_check_branch
      %18 = sbr.rel (0) target = $region17
    $region16: #{tpu_custom_call.1} parent=1 // pred_region
      _
    $region17: #{tpu_custom_call.1} parent=1 // pred_fallthru
      _
    // Predicated region
    $region18: #{tpu_custom_call.1} parent=1 // pred_check
      _
    $region19: #{tpu_custom_call.1} parent=1 // pred_check_branch
      %20 = sbr.rel (0) target = $region21
    $region20: #{tpu_custom_call.1} parent=1 // pred_region
      _
    $region21: #{tpu_custom_call.1} parent=1 // pred_fallthru
      _
    %v21 = vld [vmem:[%s0] sm:$0x3]
    %v22 = vld [vmem:[%s1] sm:$0xff]
    %v23 = vld [vmem:[%s1 + $0x8] sm:$0xff]
    %v24 = vld [vmem:[%s2] sm:$0x1]
    %v26 = vlaneseq
    %v27 = vshrl.u32 %v26, 7
    %v28 = vsub.s32 0, %v27
    %v29 = vrot.slane %v24, %v28
    %vm31 = vcmask 130048
    %v33 = vsel %vm31, %v21, 0
    %35 = vmatprep.subr.mxu0 0.0
    %36 = vmatpush1.msra.mxu0 0.0
    %37 = vmatprep.subr.mxu0 0.0
    %38 = vmatpush1.msra.mxu0 0.0
    %39 = vmatprep.subr.mxu0 0.0
    %40 = vmatpush1.msra.mxu0 0.0
    %41 = vmatprep.subr.mxu0 0.0
    %42 = vmatpush1.msra.mxu0 0.0
    %43 = vmatprep.subr.mxu0 0.0
    %44 = vmatpush1.msra.mxu0 0.0
    %45 = vmatprep.subr.mxu0 0.0
    %46 = vmatpush1.msra.mxu0 0.0
    %47 = vmatprep.subr.mxu0 0.0
    %48 = vmatpush1.msra.mxu0 0.0
    %49 = vmatprep.subr.mxu0 0.0
    %50 = vmatpush1.msra.mxu0 0.0
    %51 = vmatprep.subr.mxu0 0.0
    %52 = vmatpush1.msra.mxu0 0.0
    %53 = vmatprep.subr.mxu0 0.0
    %54 = vmatpush1.msra.mxu0 0.0
    %55 = vmatprep.subr.mxu0 0.0
    %56 = vmatpush1.msra.mxu0 0.0
    %57 = vmatprep.subr.mxu0 0.0
    %58 = vmatpush1.msra.mxu0 0.0
    %59 = vmatprep.subr.mxu0 0.0
    %60 = vmatpush1.msra.mxu0 0.0
    %61 = vmatprep.subr.mxu0 0.0
    %62 = vmatpush1.msra.mxu0 0.0
    %63 = vmatprep.subr.mxu0 0.0
    %64 = vmatpush1.msra.mxu0 %v23
    %65 = vmatprep.subr.mxu0 0.0
    %66 = vmatpush1.msra.mxu0 %v22
    %67 = vmatprep.subr.mxu0 0.0
    %68 = vmatpush2.msra.mxu0 0.0
    %69 = vmatprep.subr.mxu0 0.0
    %70 = vmatpush2.msra.mxu0 0.0
    %71 = vmatprep.subr.mxu0 0.0
    %72 = vmatpush2.msra.mxu0 0.0
    %73 = vmatprep.subr.mxu0 0.0
    %74 = vmatpush2.msra.mxu0 0.0
    %75 = vmatprep.subr.mxu0 0.0
    %76 = vmatpush2.msra.mxu0 0.0
    %77 = vmatprep.subr.mxu0 0.0
    %78 = vmatpush2.msra.mxu0 0.0
    %79 = vmatprep.subr.mxu0 0.0
    %80 = vmatpush2.msra.mxu0 0.0
    %81 = vmatprep.subr.mxu0 0.0
    %82 = vmatpush2.msra.mxu0 0.0
    %83 = vmatprep.subr.mxu0 0.0
    %84 = vmatpush2.msra.mxu0 0.0
    %85 = vmatprep.subr.mxu0 0.0
    %86 = vmatpush2.msra.mxu0 0.0
    %87 = vmatprep.subr.mxu0 0.0
    %88 = vmatpush2.msra.mxu0 0.0
    %89 = vmatprep.subr.mxu0 0.0
    %90 = vmatpush2.msra.mxu0 0.0
    %91 = vmatprep.subr.mxu0 0.0
    %92 = vmatpush2.msra.mxu0 0.0
    %93 = vmatprep.subr.mxu0 0.0
    %94 = vmatpush2.msra.mxu0 0.0
    %95 = vmatprep.subr.mxu0 0.0
    %96 = vmatpush2.msra.mxu0 0.0
    %97 = vmatprep.subr.mxu0 0.0
    %98 = vmatpush2.msra.mxu0 0.0
    %99 = vmatprep.mubr.f32.mxu0 0.0
    %100 = vmatmul.mubr.f32.gmra.mxu0 %v33
    %v101 = vpop.f32.mrf.mxu0
    %v102 = vadd.f32 %v29, %v101
    %v103 = vpop.f32.mrf.mxu0
    %104 = vdwg.mxu0
    %v105 = vtanh.pop %v102
    %v106 = vld [vmem:[%s3] sm:$0xff]
    %v107 = vld [vmem:[%s3 + $0x8] sm:$0xff]
    %v108 = vld [vmem:[%s3 + $0x10] sm:$0xff]
    %v109 = vld [vmem:[%s3 + $0x18] sm:$0x3f]
    %v110 = vld [vmem:[%s4] sm:$0x1]
    %v112 = vlaneseq
    %v113 = vshrl.u32 %v112, 7
    %v114 = vsub.s32 0, %v113
    %v115 = vrot.slane %v110, %v114
    %vm117 = vcmask 244736
    %v119 = vsel %vm117, %v105, 0
    %vm121 = vcmask 1045504
    %v123 = vsel %vm121, %v109, 0
    %125 = vmatprep.subr.mxu0 0.0
    %126 = vmatpush1.msra.mxu0 0.0
    %127 = vmatprep.subr.mxu0 0.0
    %128 = vmatpush1.msra.mxu0 0.0
    %129 = vmatprep.subr.mxu0 0.0
    %130 = vmatpush1.msra.mxu0 0.0
    %131 = vmatprep.subr.mxu0 0.0
    %132 = vmatpush1.msra.mxu0 0.0
    %133 = vmatprep.subr.mxu0 0.0
    %134 = vmatpush1.msra.mxu0 0.0
    %135 = vmatprep.subr.mxu0 0.0
    %136 = vmatpush1.msra.mxu0 0.0
    %137 = vmatprep.subr.mxu0 0.0
    %138 = vmatpush1.msra.mxu0 0.0
    %139 = vmatprep.subr.mxu0 0.0
    %140 = vmatpush1.msra.mxu0 0.0
    %141 = vmatprep.subr.mxu0 0.0
    %142 = vmatpush1.msra.mxu0 0.0
    %143 = vmatprep.subr.mxu0 0.0
    %144 = vmatpush1.msra.mxu0 0.0
    %145 = vmatprep.subr.mxu0 0.0
    %146 = vmatpush1.msra.mxu0 0.0
    %147 = vmatprep.subr.mxu0 0.0
    %148 = vmatpush1.msra.mxu0 0.0
    %149 = vmatprep.subr.mxu0 0.0
    %150 = vmatpush1.msra.mxu0 %v123
    %151 = vmatprep.subr.mxu0 0.0
    %152 = vmatpush1.msra.mxu0 %v108
    %153 = vmatprep.subr.mxu0 0.0
    %154 = vmatpush1.msra.mxu0 %v107
    %155 = vmatprep.subr.mxu0 0.0
    %156 = vmatpush1.msra.mxu0 %v106
    %157 = vmatprep.subr.mxu0 0.0
    %158 = vmatpush2.msra.mxu0 0.0
    %159 = vmatprep.subr.mxu0 0.0
    %160 = vmatpush2.msra.mxu0 0.0
    %161 = vmatprep.subr.mxu0 0.0
    %162 = vmatpush2.msra.mxu0 0.0
    %163 = vmatprep.subr.mxu0 0.0
    %164 = vmatpush2.msra.mxu0 0.0
    %165 = vmatprep.subr.mxu0 0.0
    %166 = vmatpush2.msra.mxu0 0.0
    %167 = vmatprep.subr.mxu0 0.0
    %168 = vmatpush2.msra.mxu0 0.0
    %169 = vmatprep.subr.mxu0 0.0
    %170 = vmatpush2.msra.mxu0 0.0
    %171 = vmatprep.subr.mxu0 0.0
    %172 = vmatpush2.msra.mxu0 0.0
    %173 = vmatprep.subr.mxu0 0.0
    %174 = vmatpush2.msra.mxu0 0.0
    %175 = vmatprep.subr.mxu0 0.0
    %176 = vmatpush2.msra.mxu0 0.0
    %177 = vmatprep.subr.mxu0 0.0
    %178 = vmatpush2.msra.mxu0 0.0
    %179 = vmatprep.subr.mxu0 0.0
    %180 = vmatpush2.msra.mxu0 0.0
    %181 = vmatprep.subr.mxu0 0.0
    %182 = vmatpush2.msra.mxu0 0.0
    %183 = vmatprep.subr.mxu0 0.0
    %184 = vmatpush2.msra.mxu0 0.0
    %185 = vmatprep.subr.mxu0 0.0
    %186 = vmatpush2.msra.mxu0 0.0
    %187 = vmatprep.subr.mxu0 0.0
    %188 = vmatpush2.msra.mxu0 0.0
    %189 = vmatprep.mubr.f32.mxu0 0.0
    %190 = vmatmul.mubr.f32.gmra.mxu0 %v119
    %v191 = vpop.f32.mrf.mxu0
    %v192 = vadd.f32 %v115, %v191
    %v193 = vpop.f32.mrf.mxu0
    %194 = vdwg.mxu0
    %vm195 = vcmask 25600
    %196 = vst.msk [vmem:[#allocation2] sm:$0x3] %vm195, %v192
    // Predicated region
    $region22: #{tpu_custom_call.1} parent=1 // pred_check
      _
    $region23: #{tpu_custom_call.1} parent=1 // pred_check_branch
      %198 = sbr.rel (0) target = $region25
    $region24: #{tpu_custom_call.1} parent=1 // pred_region
      %s200 = ssub.s32 32, 32
      %201 = vsyncadd [#allocation3], %s200
      %s203 = sshll.u32 [#allocation2], 4
      %s204 = int_to_ptr.vmem [resolvable:$true] %s203
      %206 = dma.vmem_to_hbm [thread:$0]  %s204, 32, %s5, [#allocation3]
    $region25: #{tpu_custom_call.1} parent=1 // pred_fallthru
      _
    // Predicated region
    $region26: #{tpu_custom_call.1} parent=1 // pred_check
      _
    $region27: #{tpu_custom_call.1} parent=1 // pred_check_branch
      %208 = sbr.rel (0) target = $region29
    $region28: #{tpu_custom_call.1} parent=1 // pred_region
      %209 = dma.done [#allocation3], 32
    $region29: #{tpu_custom_call.1} parent=1 // pred_fallthru
      _
    %210 = vsyncpa [#allocation3], 1

</llo_original>
